<compile_context>
chip_gen: v6e
topology: v6e:2x2x1
jax: 0.10.0
libtpu: 0.0.40
codegen_flags: <defaults>
</compile_context>

<pallas_src>
import functools

import jax
import jax.numpy as jnp
from jax import lax
from jax.experimental import pallas as pl
from jax.experimental.pallas import tpu as pltpu


def _word_fusion_kernel(x_ref, gamma_ref, beta_ref, wscore_ref, wout_ref,
                        bo_ref, gum_ref, out_ref, *, num_heads, num_words,
                        tau, eps):
    x = x_ref[...]                                          # (RT, Dq) f32

    # --- SubLayerConnection: LayerNorm over last dim (PyTorch eps=1e-5) ---
    mean = jnp.mean(x, axis=-1, keepdims=True)
    var = jnp.mean((x - mean) ** 2, axis=-1, keepdims=True)
    xn = (x - mean) * lax.rsqrt(var + eps)
    xn = xn * gamma_ref[...] + beta_ref[...]

    # --- all heads' scaled attention logits in ONE MXU matmul ---
    # scores[r, h*Nw + w] == scale * <q_h[r], k_h[w]>  (Wq, Wk, emb pre-folded)
    scores = jnp.dot(xn, wscore_ref[...], preferred_element_type=jnp.float32)
    g = (scores + gum_ref[...]) / tau     # tau > 0 does not change the argmax

    # --- hard Gumbel-softmax forward: one-hot argmax inside each head segment ---
    rt, hnw = g.shape
    col = lax.broadcasted_iota(jnp.int32, (num_heads, rt, hnw), 2)
    head = lax.broadcasted_iota(jnp.int32, (num_heads, rt, hnw), 0)
    in_seg = (col >= head * num_words) & (col < (head + 1) * num_words)
    g3 = jnp.broadcast_to(g[None, :, :], (num_heads, rt, hnw))
    masked = jnp.where(in_seg, g3, -jnp.inf)
    m = jnp.max(masked, axis=-1, keepdims=True)             # per (head,row) max
    cand = jnp.where(masked >= m, col, hnw)
    first = jnp.min(cand, axis=-1, keepdims=True)           # first argmax column
    attn = jnp.sum((col == first).astype(jnp.float32), axis=0)   # (RT, H*Nw)

    # --- attn@V, head merge and to_out Linear folded into ONE MXU matmul ---
    proj = jnp.dot(attn, wout_ref[...],
                   preferred_element_type=jnp.float32) + bo_ref[...]

    # --- residual connection; single full-width store ---
    out_ref[...] = x + proj


def word_fusion_block(queries, params, gumbel_noise, *, num_heads, tau=1.0):
    B, Nq, Dq = queries.shape
    Nw, Dw = params["emb"].shape
    E = params["wq"].shape[1]
    assert E % num_heads == 0
    H = num_heads
    dh = E // H
    scale = dh ** -0.5
    R = B * Nq
    HNw = H * Nw

    # --- fold every batch-independent projection once, outside the kernel ---
    k = jnp.dot(params["emb"], params["wk"])                 # (Nw, E)
    v = jnp.dot(params["emb"], params["wv"])                 # (Nw, E)
    wq_h = params["wq"].reshape(Dq, H, dh)
    k_h = k.reshape(Nw, H, dh)
    wscore = (jnp.einsum("dhe,whe->dhw", wq_h, k_h) * scale).reshape(Dq, HNw)
    v_h = v.reshape(Nw, H, dh)
    wo_h = params["wo"].reshape(H, dh, Dq)
    wout = jnp.einsum("whe,hed->hwd", v_h, wo_h).reshape(HNw, Dq)

    # --- flatten batch into the row axis ---
    x2 = queries.reshape(R, Dq)
    gum2 = jnp.transpose(gumbel_noise, (0, 2, 1, 3)).reshape(R, HNw)

    # 2-way row split keeps both v7x TensorCores busy; ~free on v5e/v6e.
    n_tiles = 2 if (R % 16 == 0) else 1
    rt = R // n_tiles

    kernel = functools.partial(_word_fusion_kernel, num_heads=H, num_words=Nw,
                               tau=tau, eps=1e-5)

    def full2d(shape):
        return pl.BlockSpec(shape, lambda i: (0, 0))

    flops = 4 * R * Dq * HNw + 16 * R * HNw + 12 * R * Dq
    bytes_accessed = 4 * (2 * R * Dq + R * HNw + 2 * Dq * HNw + 3 * Dq)

    out2 = pl.pallas_call(
        kernel,
        out_shape=jax.ShapeDtypeStruct((R, Dq), jnp.float32),
        grid_spec=pltpu.PrefetchScalarGridSpec(
            num_scalar_prefetch=0,
            grid=(n_tiles,),
            in_specs=[
                pl.BlockSpec((rt, Dq), lambda i: (i, 0)),    # flattened queries
                full2d((1, Dq)),                             # LayerNorm gamma
                full2d((1, Dq)),                             # LayerNorm beta
                full2d((Dq, HNw)),                           # folded score weights
                full2d((HNw, Dq)),                           # folded output weights
                full2d((1, Dq)),                             # to_out bias
                pl.BlockSpec((rt, HNw), lambda i: (i, 0)),   # gumbel noise
            ],
            out_specs=pl.BlockSpec((rt, Dq), lambda i: (i, 0)),
        ),
        compiler_params=pltpu.CompilerParams(
            dimension_semantics=("parallel",)),
        cost_estimate=pl.CostEstimate(flops=flops, transcendentals=R,
                                      bytes_accessed=bytes_accessed),
    )(x2, params["gamma"], params["beta"], wscore, wout, params["bo"], gum2)

    return out2.reshape(B, Nq, Dq)


def _reference(queries, params, gumbel_noise, *, num_heads, tau):
    """Pure-JAX reference following the original PyTorch module structure."""
    B, Nq, Dq = queries.shape
    Nw, _ = params["emb"].shape
    E = params["wq"].shape[1]
    dh = E // num_heads
    scale = dh ** -0.5
    x = queries
    mean = x.mean(-1, keepdims=True)
    var = ((x - mean) ** 2).mean(-1, keepdims=True)
    xn = (x - mean) / jnp.sqrt(var + 1e-5) * params["gamma"] + params["beta"]
    q = xn @ params["wq"]                                    # (B, Nq, E)
    k = params["emb"] @ params["wk"]                         # (Nw, E)
    v = params["emb"] @ params["wv"]                         # (Nw, E)
    qh = q.reshape(B, Nq, num_heads, dh).transpose(0, 2, 1, 3)
    kh = k.reshape(Nw, num_heads, dh).transpose(1, 0, 2)
    vh = v.reshape(Nw, num_heads, dh).transpose(1, 0, 2)
    dots = jnp.einsum("bhqd,hwd->bhqw", qh, kh) * scale
    g = (dots + gumbel_noise) / tau
    attn = jax.nn.one_hot(jnp.argmax(g, axis=-1), Nw, dtype=jnp.float32)
    o = jnp.einsum("bhqw,hwd->bhqd", attn, vh)
    o = o.transpose(0, 2, 1, 3).reshape(B, Nq, E)
    return x + o @ params["wo"] + params["bo"]


if __name__ == "__main__":
    # small shapes consistent with the module's forward
    B, Nq, Dq = 2, 8, 32          # batch, num_queries, queries_dim
    Nw, Dw = 16, 16               # num_words, glove word_dim
    E, H = 32, 4                  # emb_dim, num_heads  (dim_head = 8)
    tau = 1.0

    key = jax.random.PRNGKey(0)
    ks = jax.random.split(key, 8)

    queries = jax.random.normal(ks[0], (B, Nq, Dq), jnp.float32)

    params = dict(
        emb=jax.random.normal(ks[1], (Nw, Dw), jnp.float32),
        wq=jax.random.normal(ks[2], (Dq, E), jnp.float32) * (Dq ** -0.5),
        wk=jax.random.normal(ks[3], (Dw, E), jnp.float32) * (Dw ** -0.5),
        wv=jax.random.normal(ks[4], (Dw, E), jnp.float32) * (Dw ** -0.5),
        wo=jax.random.normal(ks[5], (E, Dq), jnp.float32) * (E ** -0.5),
        bo=jnp.zeros((1, Dq), jnp.float32),
        gamma=jnp.ones((1, Dq), jnp.float32),   # nn.LayerNorm init
        beta=jnp.zeros((1, Dq), jnp.float32),
    )

    # TODO(synk): Gumbel noise is drawn with JAX's PRNG (host-side), not the
    # torch Gumbel sampler, so the random draw differs but the distribution and
    # hard one-hot forward semantics match.
    gumbel_noise = jax.random.gumbel(ks[6], (B, H, Nq, Nw), jnp.float32)

    out = word_fusion_block(queries, params, gumbel_noise, num_heads=H, tau=tau)
    jax.block_until_ready(out)
    assert out.shape == (B, Nq, Dq) and out.dtype == jnp.float32
    assert bool(jnp.all(jnp.isfinite(out)))

    with jax.default_matmul_precision("highest"):
        ref = _reference(queries, params, gumbel_noise, num_heads=H, tau=tau)
    assert jnp.allclose(out, ref, atol=2e-3, rtol=2e-3), \
        float(jnp.max(jnp.abs(out - ref)))
    print("KERNEL_OK")
</pallas_src>

<mosaic_0001>
module attributes {stable_mosaic.version = 11 : i64} {
  func.func @_word_fusion_kernel(%arg0: i32, %arg1: memref<8x32xf32, #tpu.memory_space<vmem>>, %arg2: memref<1x32xf32, #tpu.memory_space<vmem>>, %arg3: memref<1x32xf32, #tpu.memory_space<vmem>>, %arg4: memref<32x64xf32, #tpu.memory_space<vmem>>, %arg5: memref<64x32xf32, #tpu.memory_space<vmem>>, %arg6: memref<1x32xf32, #tpu.memory_space<vmem>>, %arg7: memref<8x64xf32, #tpu.memory_space<vmem>>, %arg8: memref<8x32xf32, #tpu.memory_space<vmem>>) attributes {dimension_semantics = [#tpu.dimension_semantics<parallel>], iteration_bounds = array<i64: 2>, scalar_prefetch = 0 : i64, scratch_operands = 0 : i64, tpu.core_type = #tpu.core_type<tc>, window_params = [{transform_indices = @transform_0, window_bounds = array<i64: 8, 32>}, {pipeline_mode = #tpu.pipeline_mode<synchronous>, transform_indices = @transform_1, window_bounds = array<i64: 1, 32>}, {pipeline_mode = #tpu.pipeline_mode<synchronous>, transform_indices = @transform_2, window_bounds = array<i64: 1, 32>}, {pipeline_mode = #tpu.pipeline_mode<synchronous>, transform_indices = @transform_3, window_bounds = array<i64: 32, 64>}, {pipeline_mode = #tpu.pipeline_mode<synchronous>, transform_indices = @transform_4, window_bounds = array<i64: 64, 32>}, {pipeline_mode = #tpu.pipeline_mode<synchronous>, transform_indices = @transform_5, window_bounds = array<i64: 1, 32>}, {transform_indices = @transform_6, window_bounds = array<i64: 8, 64>}, {transform_indices = @transform_7, window_bounds = array<i64: 8, 32>}]} {
    %c0 = arith.constant 0 : index
    %c0_0 = arith.constant 0 : index
    %0 = vector.load %arg1[%c0, %c0_0] : memref<8x32xf32, #tpu.memory_space<vmem>>, vector<8x32xf32>
    %cst = arith.constant dense<0.000000e+00> : vector<8xf32>
    %1 = vector.multi_reduction <add>, %0, %cst [1] : vector<8x32xf32> to vector<8xf32>
    %2 = vector.shape_cast %1 : vector<8xf32> to vector<8x1xf32>
    %cst_1 = arith.constant 3.200000e+01 : f32
    %3 = vector.broadcast %cst_1 : f32 to vector<8x1xf32>
    %4 = arith.divf %2, %3 : vector<8x1xf32>
    %5 = vector.broadcast %4 : vector<8x1xf32> to vector<8x32xf32>
    %6 = arith.subf %0, %5 : vector<8x32xf32>
    %7 = arith.mulf %6, %6 : vector<8x32xf32>
    %cst_2 = arith.constant dense<0.000000e+00> : vector<8xf32>
    %8 = vector.multi_reduction <add>, %7, %cst_2 [1] : vector<8x32xf32> to vector<8xf32>
    %9 = vector.shape_cast %8 : vector<8xf32> to vector<8x1xf32>
    %cst_3 = arith.constant 3.200000e+01 : f32
    %10 = vector.broadcast %cst_3 : f32 to vector<8x1xf32>
    %11 = arith.divf %9, %10 : vector<8x1xf32>
    %12 = vector.broadcast %4 : vector<8x1xf32> to vector<8x32xf32>
    %13 = arith.subf %0, %12 : vector<8x32xf32>
    %cst_4 = arith.constant 9.99999974E-6 : f32
    %14 = vector.broadcast %cst_4 : f32 to vector<8x1xf32>
    %15 = arith.addf %11, %14 : vector<8x1xf32>
    %16 = math.rsqrt %15 : vector<8x1xf32>
    %17 = vector.broadcast %16 : vector<8x1xf32> to vector<8x32xf32>
    %18 = arith.mulf %13, %17 : vector<8x32xf32>
    %c0_5 = arith.constant 0 : index
    %c0_6 = arith.constant 0 : index
    %19 = vector.load %arg2[%c0_5, %c0_6] : memref<1x32xf32, #tpu.memory_space<vmem>>, vector<1x32xf32>
    %20 = vector.broadcast %19 : vector<1x32xf32> to vector<8x32xf32>
    %21 = arith.mulf %18, %20 : vector<8x32xf32>
    %c0_7 = arith.constant 0 : index
    %c0_8 = arith.constant 0 : index
    %22 = vector.load %arg3[%c0_7, %c0_8] : memref<1x32xf32, #tpu.memory_space<vmem>>, vector<1x32xf32>
    %23 = vector.broadcast %22 : vector<1x32xf32> to vector<8x32xf32>
    %24 = arith.addf %21, %23 : vector<8x32xf32>
    %c0_9 = arith.constant 0 : index
    %c0_10 = arith.constant 0 : index
    %25 = vector.load %arg4[%c0_9, %c0_10] : memref<32x64xf32, #tpu.memory_space<vmem>>, vector<32x64xf32>
    %cst_11 = arith.constant dense<0.000000e+00> : vector<8x64xf32>
    %26 = tpu.matmul %24, %25, %cst_11 {dimension_numbers = #tpu.dot_dimension_numbers<[1], [0], [0], [1], [0, 0, 1, 1], [], []>} : vector<8x32xf32>, vector<32x64xf32>, vector<8x64xf32> -> vector<8x64xf32>
    %c0_12 = arith.constant 0 : index
    %c0_13 = arith.constant 0 : index
    %27 = vector.load %arg7[%c0_12, %c0_13] : memref<8x64xf32, #tpu.memory_space<vmem>>, vector<8x64xf32>
    %28 = arith.addf %26, %27 : vector<8x64xf32>
    %cst_14 = arith.constant 1.000000e+00 : f32
    %29 = vector.broadcast %cst_14 : f32 to vector<8x64xf32>
    %30 = arith.divf %28, %29 : vector<8x64xf32>
    %31 = tpu.iota {dimensions = array<i32: 2>} : vector<4x8x64xi32>
    %32 = tpu.iota {dimensions = array<i32: 0>} : vector<4x8x64xi32>
    %c16_i32 = arith.constant 16 : i32
    %33 = vector.broadcast %c16_i32 : i32 to vector<4x8x64xi32>
    %34 = arith.muli %32, %33 : vector<4x8x64xi32>
    %35 = arith.cmpi sge, %31, %34 : vector<4x8x64xi32>
    %c1_i32 = arith.constant 1 : i32
    %36 = vector.broadcast %c1_i32 : i32 to vector<4x8x64xi32>
    %37 = arith.addi %32, %36 : vector<4x8x64xi32>
    %c16_i32_15 = arith.constant 16 : i32
    %38 = vector.broadcast %c16_i32_15 : i32 to vector<4x8x64xi32>
    %39 = arith.muli %37, %38 : vector<4x8x64xi32>
    %40 = arith.cmpi slt, %31, %39 : vector<4x8x64xi32>
    %41 = arith.andi %35, %40 : vector<4x8x64xi1>
    %42 = vector.shape_cast %30 : vector<8x64xf32> to vector<1x8x64xf32>
    %43 = vector.shape_cast %42 : vector<1x8x64xf32> to vector<1x8x64xf32>
    %44 = vector.broadcast %43 : vector<1x8x64xf32> to vector<4x8x64xf32>
    %cst_16 = arith.constant 0xFF800000 : f32
    %45 = vector.broadcast %cst_16 : f32 to vector<4x8x64xf32>
    %46 = arith.select %41, %44, %45 : vector<4x8x64xi1>, vector<4x8x64xf32>
    %cst_17 = arith.constant dense<0xFF800000> : vector<4x8xf32>
    %47 = vector.multi_reduction <maximumf>, %46, %cst_17 [2] : vector<4x8x64xf32> to vector<4x8xf32>
    %48 = vector.shape_cast %47 : vector<4x8xf32> to vector<4x8x1xf32>
    %49 = vector.broadcast %48 : vector<4x8x1xf32> to vector<4x8x64xf32>
    %50 = arith.cmpf oge, %46, %49 : vector<4x8x64xf32>
    %c64_i32 = arith.constant 64 : i32
    %51 = vector.broadcast %c64_i32 : i32 to vector<4x8x64xi32>
    %52 = arith.select %50, %31, %51 : vector<4x8x64xi1>, vector<4x8x64xi32>
    %cst_18 = arith.constant dense<2147483647> : vector<4x8xi32>
    %53 = vector.multi_reduction <minsi>, %52, %cst_18 [2] : vector<4x8x64xi32> to vector<4x8xi32>
    %54 = vector.shape_cast %53 : vector<4x8xi32> to vector<4x8x1xi32>
    %55 = vector.broadcast %54 : vector<4x8x1xi32> to vector<4x8x64xi32>
    %56 = arith.cmpi eq, %31, %55 : vector<4x8x64xi32>
    %57 = arith.extui %56 : vector<4x8x64xi1> to vector<4x8x64xi32>
    %58 = arith.sitofp %57 : vector<4x8x64xi32> to vector<4x8x64xf32>
    %cst_19 = arith.constant dense<0.000000e+00> : vector<8x64xf32>
    %59 = vector.multi_reduction <add>, %58, %cst_19 [0] : vector<4x8x64xf32> to vector<8x64xf32>
    %c0_20 = arith.constant 0 : index
    %c0_21 = arith.constant 0 : index
    %60 = vector.load %arg5[%c0_20, %c0_21] : memref<64x32xf32, #tpu.memory_space<vmem>>, vector<64x32xf32>
    %cst_22 = arith.constant dense<0.000000e+00> : vector<8x32xf32>
    %61 = tpu.matmul %59, %60, %cst_22 {dimension_numbers = #tpu.dot_dimension_numbers<[1], [0], [0], [1], [0, 0, 1, 1], [], []>} : vector<8x64xf32>, vector<64x32xf32>, vector<8x32xf32> -> vector<8x32xf32>
    %c0_23 = arith.constant 0 : index
    %c0_24 = arith.constant 0 : index
    %62 = vector.load %arg6[%c0_23, %c0_24] : memref<1x32xf32, #tpu.memory_space<vmem>>, vector<1x32xf32>
    %63 = vector.broadcast %62 : vector<1x32xf32> to vector<8x32xf32>
    %64 = arith.addf %61, %63 : vector<8x32xf32>
    %65 = arith.addf %0, %64 : vector<8x32xf32>
    %c0_25 = arith.constant 0 : index
    %c0_26 = arith.constant 0 : index
    %66 = vector.load %arg8[%c0_25, %c0_26] : memref<8x32xf32, #tpu.memory_space<vmem>>, vector<8x32xf32>
    tpu.vector_store %arg8[%c0_25, %c0_26], %65 {strides = array<i32>} : memref<8x32xf32, #tpu.memory_space<vmem>>, vector<8x32xf32>,
    return
  }
  func.func @transform_0(%arg0: i32) -> (i32, i32) {
    %c0_i32 = arith.constant 0 : i32
    %c0_i32_0 = arith.constant 0 : i32
    return %arg0, %c0_i32 : i32, i32
  }
  func.func @transform_1(%arg0: i32) -> (i32, i32) {
    %c0_i32 = arith.constant 0 : i32
    %c0_i32_0 = arith.constant 0 : i32
    %c0_i32_1 = arith.constant 0 : i32
    return %c0_i32, %c0_i32_0 : i32, i32
  }
  func.func @transform_2(%arg0: i32) -> (i32, i32) {
    %c0_i32 = arith.constant 0 : i32
    %c0_i32_0 = arith.constant 0 : i32
    %c0_i32_1 = arith.constant 0 : i32
    return %c0_i32, %c0_i32_0 : i32, i32
  }
  func.func @transform_3(%arg0: i32) -> (i32, i32) {
    %c0_i32 = arith.constant 0 : i32
    %c0_i32_0 = arith.constant 0 : i32
    %c0_i32_1 = arith.constant 0 : i32
    return %c0_i32, %c0_i32_0 : i32, i32
  }
  func.func @transform_4(%arg0: i32) -> (i32, i32) {
    %c0_i32 = arith.constant 0 : i32
    %c0_i32_0 = arith.constant 0 : i32
    %c0_i32_1 = arith.constant 0 : i32
    return %c0_i32, %c0_i32_0 : i32, i32
  }
  func.func @transform_5(%arg0: i32) -> (i32, i32) {
    %c0_i32 = arith.constant 0 : i32
    %c0_i32_0 = arith.constant 0 : i32
    %c0_i32_1 = arith.constant 0 : i32
    return %c0_i32, %c0_i32_0 : i32, i32
  }
  func.func @transform_6(%arg0: i32) -> (i32, i32) {
    %c0_i32 = arith.constant 0 : i32
    %c0_i32_0 = arith.constant 0 : i32
    return %arg0, %c0_i32 : i32, i32
  }
  func.func @transform_7(%arg0: i32) -> (i32, i32) {
    %c0_i32 = arith.constant 0 : i32
    %c0_i32_0 = arith.constant 0 : i32
    return %arg0, %c0_i32 : i32, i32
  }
}

</mosaic_0001>

<llo_original>
// kernel: tpu_custom_call.1
$region0: #{tpu_custom_call.1}
  #allocation0 [shape = 'u32[]', space=smem, size = 0x4, offset = 0x4, fixed_abs, tag = 'smem constant byte address 0x4 - core index']
  #allocation1 [shape = 'u32[144,128]{1,0:T(1,128)}', space=vmem, size = 0x12000, scoped, tag = 'internal scratch']
  %s0 = inlined_call_operand.vmem [shape: f32[16,32], index: 0, kind: input, shape index: {}]
  %s1 = inlined_call_operand.vmem [shape: f32[1,32], index: 1, kind: input, shape index: {}]
  %s2 = inlined_call_operand.vmem [shape: f32[1,32], index: 2, kind: input, shape index: {}]
  %s3 = inlined_call_operand.vmem [shape: f32[32,64], index: 3, kind: input, shape index: {}]
  %s4 = inlined_call_operand.vmem [shape: f32[64,32], index: 4, kind: input, shape index: {}]
  %s5 = inlined_call_operand.vmem [shape: f32[1,32], index: 5, kind: input, shape index: {}]
  %s6 = inlined_call_operand.vmem [shape: f32[16,64], index: 6, kind: input, shape index: {}]
  %s7 = inlined_call_operand.hbm [shape: f32[16,32], index: 7, kind: output, shape index: {}]
  %s8 = sld [smem:[#allocation0]]
  $region61: #{tpu_custom_call.1} parent=0
    _
  %s10 = ssub.s32 1, %s8
  %s11 = scalar_select 0, %s10, %s8
  $region1: #{tpu_custom_call.1} parent=0
    #allocation2 [shape = 'u8[8192]{0}', space=vmem, size = 0x2000, scoped, tag = 'output window, operand 0']
    #allocation3 [shape = 's32[2]{0}', space=sflag, size = 0x8, scoped, tag = 'scoped memory for tpu_custom_call.1']
    %12 = vsyncpa [#allocation3], 0
    %s13 = scalar_lea.sflag [#allocation3], 1
    %14 = vsyncpa %s13, 0
    loop: start=0, step=1, limit=4
    $region2: #{tpu_custom_call.1} parent=1 // loop_pre_header
      _
    $region3: #{tpu_custom_call.1} parent=1 // loop_header
      %s16 = sphi 0, %s20
      %p17 = scmp.ge.s32.totalorder %s16, 4
      %s26 = sphi 0, %s28
      %s29 = sphi 0, %s26
      %s30 = sphi 0, %s29
      %s46 = sphi 0, %s30
      %s50 = sphi 0, %s50
      %s52 = sphi 0, %s50
      %s53 = sphi 0, %s52
      %s67 = sphi 0, %s53
      %s71 = sphi 0, %s71
      %s73 = sphi 0, %s71
      %s74 = sphi 0, %s73
      %s88 = sphi 0, %s74
      %s92 = sphi 0, %s92
      %s94 = sphi 0, %s92
      %s95 = sphi 0, %s94
      %s109 = sphi 0, %s95
      %s113 = sphi 0, %s113
      %s115 = sphi 0, %s113
      %s116 = sphi 0, %s115
      %s130 = sphi 0, %s116
      %s134 = sphi 0, %s134
      %s136 = sphi 0, %s134
      %s137 = sphi 0, %s136
      %s151 = sphi 0, %s137
      %s157 = sphi 0, %s159
      %s160 = sphi 0, %s157
      %s161 = sphi 0, %s160
      %s177 = sphi 0, %s161
      %s183 = sphi 0, %s185
      %s186 = sphi 0, %s183
      %s187 = sphi 0, %s186
      %s203 = sphi 0, %s187
    $region4: #{tpu_custom_call.1} parent=1 // loop_header_branch
      %19 = sbr.rel (%p17) target = $region8
    $region5: #{tpu_custom_call.1} parent=1 // loop_body
      %s21 = ssub.s32 %s16, 1
      %s22 = ssub.s32 %s16, 2
      %s23 = sadd.s32 %s16, 1
      %s24 = ssub.s32 %s16, %s23
      %p25 = scmp.eq.s32.totalorder %s24, 0
      %s27 = sadd.s32 %s26, 1
      %s28 = scalar_select %p25, %s26, %s27
      %p31 = pneg %p25
      %p32 = scmp.eq.s32.totalorder %s16, 1
      %p33 = por %p31, %p32
      %p34 = scmp.ne.s32.totalorder %s26, %s29
      %p35 = scmp.eq.s32.totalorder %s16, 0
      %p36 = por %p34, %p35
      %p37 = scmp.ne.s32.totalorder %s26, %s29
      %p38 = scmp.eq.s32.totalorder %s21, 1
      %p39 = por %p37, %p38
      %p40 = scmp.ne.s32.totalorder %s29, %s30
      %p41 = scmp.eq.s32.totalorder %s21, 0
      %p42 = por %p40, %p41
      %p43 = scmp.ne.s32.totalorder %s29, %s30
      %p44 = scmp.eq.s32.totalorder %s22, 1
      %p45 = por %p43, %p44
      %p47 = scmp.ne.s32.totalorder %s30, %s46
      %p48 = scmp.eq.s32.totalorder %s22, 0
      %p49 = por %p47, %p48
      %s51 = sadd.s32 %s50, 1
      %p54 = scmp.eq.s32.totalorder %s16, 1
      %p55 = scmp.ne.s32.totalorder %s50, %s52
      %p56 = scmp.eq.s32.totalorder %s16, 0
      %p57 = por %p55, %p56
      %p58 = scmp.ne.s32.totalorder %s50, %s52
      %p59 = scmp.eq.s32.totalorder %s21, 1
      %p60 = por %p58, %p59
      %p61 = scmp.ne.s32.totalorder %s52, %s53
      %p62 = scmp.eq.s32.totalorder %s21, 0
      %p63 = por %p61, %p62
      %p64 = scmp.ne.s32.totalorder %s52, %s53
      %p65 = scmp.eq.s32.totalorder %s22, 1
      %p66 = por %p64, %p65
      %p68 = scmp.ne.s32.totalorder %s53, %s67
      %p69 = scmp.eq.s32.totalorder %s22, 0
      %p70 = por %p68, %p69
      %s72 = sadd.s32 %s71, 1
      %p75 = scmp.eq.s32.totalorder %s16, 1
      %p76 = scmp.ne.s32.totalorder %s71, %s73
      %p77 = scmp.eq.s32.totalorder %s16, 0
      %p78 = por %p76, %p77
      %p79 = scmp.ne.s32.totalorder %s71, %s73
      %p80 = scmp.eq.s32.totalorder %s21, 1
      %p81 = por %p79, %p80
      %p82 = scmp.ne.s32.totalorder %s73, %s74
      %p83 = scmp.eq.s32.totalorder %s21, 0
      %p84 = por %p82, %p83
      %p85 = scmp.ne.s32.totalorder %s73, %s74
      %p86 = scmp.eq.s32.totalorder %s22, 1
      %p87 = por %p85, %p86
      %p89 = scmp.ne.s32.totalorder %s74, %s88
      %p90 = scmp.eq.s32.totalorder %s22, 0
      %p91 = por %p89, %p90
      %s93 = sadd.s32 %s92, 1
      %p96 = scmp.eq.s32.totalorder %s16, 1
      %p97 = scmp.ne.s32.totalorder %s92, %s94
      %p98 = scmp.eq.s32.totalorder %s16, 0
      %p99 = por %p97, %p98
      %p100 = scmp.ne.s32.totalorder %s92, %s94
      %p101 = scmp.eq.s32.totalorder %s21, 1
      %p102 = por %p100, %p101
      %p103 = scmp.ne.s32.totalorder %s94, %s95
      %p104 = scmp.eq.s32.totalorder %s21, 0
      %p105 = por %p103, %p104
      %p106 = scmp.ne.s32.totalorder %s94, %s95
      %p107 = scmp.eq.s32.totalorder %s22, 1
      %p108 = por %p106, %p107
      %p110 = scmp.ne.s32.totalorder %s95, %s109
      %p111 = scmp.eq.s32.totalorder %s22, 0
      %p112 = por %p110, %p111
      %s114 = sadd.s32 %s113, 1
      %p117 = scmp.eq.s32.totalorder %s16, 1
      %p118 = scmp.ne.s32.totalorder %s113, %s115
      %p119 = scmp.eq.s32.totalorder %s16, 0
      %p120 = por %p118, %p119
      %p121 = scmp.ne.s32.totalorder %s113, %s115
      %p122 = scmp.eq.s32.totalorder %s21, 1
      %p123 = por %p121, %p122
      %p124 = scmp.ne.s32.totalorder %s115, %s116
      %p125 = scmp.eq.s32.totalorder %s21, 0
      %p126 = por %p124, %p125
      %p127 = scmp.ne.s32.totalorder %s115, %s116
      %p128 = scmp.eq.s32.totalorder %s22, 1
      %p129 = por %p127, %p128
      %p131 = scmp.ne.s32.totalorder %s116, %s130
      %p132 = scmp.eq.s32.totalorder %s22, 0
      %p133 = por %p131, %p132
      %s135 = sadd.s32 %s134, 1
      %p138 = scmp.eq.s32.totalorder %s16, 1
      %p139 = scmp.ne.s32.totalorder %s134, %s136
      %p140 = scmp.eq.s32.totalorder %s16, 0
      %p141 = por %p139, %p140
      %p142 = scmp.ne.s32.totalorder %s134, %s136
      %p143 = scmp.eq.s32.totalorder %s21, 1
      %p144 = por %p142, %p143
      %p145 = scmp.ne.s32.totalorder %s136, %s137
      %p146 = scmp.eq.s32.totalorder %s21, 0
      %p147 = por %p145, %p146
      %p148 = scmp.ne.s32.totalorder %s136, %s137
      %p149 = scmp.eq.s32.totalorder %s22, 1
      %p150 = por %p148, %p149
      %p152 = scmp.ne.s32.totalorder %s137, %s151
      %p153 = scmp.eq.s32.totalorder %s22, 0
      %p154 = por %p152, %p153
      %s155 = ssub.s32 %s16, %s23
      %p156 = scmp.eq.s32.totalorder %s155, 0
      %s158 = sadd.s32 %s157, 1
      %s159 = scalar_select %p156, %s157, %s158
      %p162 = pneg %p156
      %p163 = scmp.eq.s32.totalorder %s16, 1
      %p164 = por %p162, %p163
      %p165 = scmp.ne.s32.totalorder %s157, %s160
      %p166 = scmp.eq.s32.totalorder %s16, 0
      %p167 = por %p165, %p166
      %p168 = scmp.ne.s32.totalorder %s157, %s160
      %p169 = scmp.eq.s32.totalorder %s21, 1
      %p170 = por %p168, %p169
      %p171 = scmp.ne.s32.totalorder %s160, %s161
      %p172 = scmp.eq.s32.totalorder %s21, 0
      %p173 = por %p171, %p172
      %p174 = scmp.ne.s32.totalorder %s160, %s161
      %p175 = scmp.eq.s32.totalorder %s22, 1
      %p176 = por %p174, %p175
      %p178 = scmp.ne.s32.totalorder %s161, %s177
      %p179 = scmp.eq.s32.totalorder %s22, 0
      %p180 = por %p178, %p179
      %s181 = ssub.s32 %s16, %s23
      %p182 = scmp.eq.s32.totalorder %s181, 0
      %s184 = sadd.s32 %s183, 1
      %s185 = scalar_select %p182, %s183, %s184
      %p188 = pneg %p182
      %p189 = scmp.eq.s32.totalorder %s16, 1
      %p190 = por %p188, %p189
      %p191 = scmp.ne.s32.totalorder %s183, %s186
      %p192 = scmp.eq.s32.totalorder %s16, 0
      %p193 = por %p191, %p192
      %p194 = scmp.ne.s32.totalorder %s183, %s186
      %p195 = scmp.eq.s32.totalorder %s21, 1
      %p196 = por %p194, %p195
      %p197 = scmp.ne.s32.totalorder %s186, %s187
      %p198 = scmp.eq.s32.totalorder %s21, 0
      %p199 = por %p197, %p198
      %p200 = scmp.ne.s32.totalorder %s186, %s187
      %p201 = scmp.eq.s32.totalorder %s22, 1
      %p202 = por %p200, %p201
      %p204 = scmp.ne.s32.totalorder %s187, %s203
      %p205 = scmp.eq.s32.totalorder %s22, 0
      %p206 = por %p204, %p205
      %p207 = scmp.le.s32.totalorder 1, %s16
      %p208 = scmp.lt.s32.totalorder %s16, 3
      %p209 = pnand %p207, %p208
      %p210 = pneg %p209
      // Predicated region
      $region9: #{tpu_custom_call.1} parent=5 // pred_check
        _
      $region10: #{tpu_custom_call.1} parent=5 // pred_check_branch
        %212 = sbr.rel (%p209) target = $region12
      $region11: #{tpu_custom_call.1} parent=5 // pred_region
        %s213 = ssub.s32 %s16, 1
        // Predicated region
        $region13: #{tpu_custom_call.1} parent=11 // pred_check
          %p214 = pneg %p63
        $region14: #{tpu_custom_call.1} parent=11 // pred_check_branch
          %216 = sbr.rel (%p214) target = $region16
        $region15: #{tpu_custom_call.1} parent=11 // pred_region
          _
        $region16: #{tpu_custom_call.1} parent=11 // pred_fallthru
          _
        // Predicated region
        $region17: #{tpu_custom_call.1} parent=11 // pred_check
          %p217 = pneg %p84
        $region18: #{tpu_custom_call.1} parent=11 // pred_check_branch
          %219 = sbr.rel (%p217) target = $region20
        $region19: #{tpu_custom_call.1} parent=11 // pred_region
          _
        $region20: #{tpu_custom_call.1} parent=11 // pred_fallthru
          _
        // Predicated region
        $region21: #{tpu_custom_call.1} parent=11 // pred_check
          %p220 = pneg %p105
        $region22: #{tpu_custom_call.1} parent=11 // pred_check_branch
          %222 = sbr.rel (%p220) target = $region24
        $region23: #{tpu_custom_call.1} parent=11 // pred_region
          _
        $region24: #{tpu_custom_call.1} parent=11 // pred_fallthru
          _
        // Predicated region
        $region25: #{tpu_custom_call.1} parent=11 // pred_check
          %p223 = pneg %p126
        $region26: #{tpu_custom_call.1} parent=11 // pred_check_branch
          %225 = sbr.rel (%p223) target = $region28
        $region27: #{tpu_custom_call.1} parent=11 // pred_region
          _
        $region28: #{tpu_custom_call.1} parent=11 // pred_fallthru
          _
        // Predicated region
        $region29: #{tpu_custom_call.1} parent=11 // pred_check
          %p226 = pneg %p147
        $region30: #{tpu_custom_call.1} parent=11 // pred_check_branch
          %228 = sbr.rel (%p226) target = $region32
        $region31: #{tpu_custom_call.1} parent=11 // pred_region
          _
        $region32: #{tpu_custom_call.1} parent=11 // pred_fallthru
          _
      $region12: #{tpu_custom_call.1} parent=5 // pred_fallthru
        _
      %p229 = scmp.lt.s32.totalorder %s16, 2
      // Predicated region
      $region33: #{tpu_custom_call.1} parent=5 // pred_check
        %p230 = pneg %p229
      $region34: #{tpu_custom_call.1} parent=5 // pred_check_branch
        %232 = sbr.rel (%p230) target = $region36
      $region35: #{tpu_custom_call.1} parent=5 // pred_region
        // Predicated region
        $region37: #{tpu_custom_call.1} parent=35 // pred_check
          %p233 = pneg %p36
        $region38: #{tpu_custom_call.1} parent=35 // pred_check_branch
          %235 = sbr.rel (%p233) target = $region40
        $region39: #{tpu_custom_call.1} parent=35 // pred_region
          %p236 = scmp.lt.s32.totalorder %s16, 1
          %s237 = scalar_select %p236, %s16, 1
          %s238 = smul.addr %s237, 8
          %s239 = scalar_lea.vmem %s0, %s238
        $region40: #{tpu_custom_call.1} parent=35 // pred_fallthru
          _
        // Predicated region
        $region41: #{tpu_custom_call.1} parent=35 // pred_check
          %p240 = pneg %p167
        $region42: #{tpu_custom_call.1} parent=35 // pred_check_branch
          %242 = sbr.rel (%p240) target = $region44
        $region43: #{tpu_custom_call.1} parent=35 // pred_region
          %p243 = scmp.lt.s32.totalorder %s16, 1
          %s244 = scalar_select %p243, %s16, 1
          %s245 = smul.addr %s244, 8
          %s246 = scalar_lea.vmem %s6, %s245
        $region44: #{tpu_custom_call.1} parent=35 // pred_fallthru
          _
      $region36: #{tpu_custom_call.1} parent=5 // pred_fallthru
        _
      %p247 = scmp.le.s32.totalorder 1, %s16
      %p248 = scmp.lt.s32.totalorder %s16, 3
      %p249 = pnand %p247, %p248
      %p250 = pneg %p249
      // Predicated region
      $region45: #{tpu_custom_call.1} parent=5 // pred_check
        _
      $region46: #{tpu_custom_call.1} parent=5 // pred_check_branch
        %252 = sbr.rel (%p249) target = $region48
      $region47: #{tpu_custom_call.1} parent=5 // pred_region
        %s253 = ssub.s32 %s16, 1
        %p254 = scmp.lt.s32.totalorder %s21, 1
        %s255 = scalar_select %p254, %s21, 1
        %s256 = smul.addr %s255, 8
        %s257 = scalar_lea.vmem %s0, %s256
        %p258 = pneg %p42
        %p259 = pneg %p39
        %p260 = pneg %p63
        %p261 = pneg %p60
        %p262 = pneg %p84
        %p263 = pneg %p81
        %p264 = pneg %p105
        %p265 = pneg %p102
        %p266 = pneg %p126
        %p267 = pneg %p123
        %p268 = pneg %p147
        %p269 = pneg %p144
        %p270 = scmp.lt.s32.totalorder %s21, 1
        %s271 = scalar_select %p270, %s21, 1
        %s272 = smul.addr %s271, 8
        %s273 = scalar_lea.vmem %s6, %s272
        %p274 = pneg %p173
        %p275 = pneg %p170
        %p276 = pneg %p199
        %p277 = pneg %p196
        %s278 = sand.u32 %s186, 1
        %s279 = scalar_lea.sflag [#allocation3], %s278
        %s280 = sand.u32 %s186, 1
        %s281 = smul.addr %s280, 8
        %s282 = scalar_lea.vmem [#allocation2], %s281
        %p283 = scmp.lt.s32.totalorder %s21, 1
        %s284 = scalar_select %p283, %s21, 1
        %s285 = smul.addr %s284, 8
        %s286 = scalar_lea.vmem %s0, %s285
        %p287 = scmp.lt.s32.totalorder %s21, 1
        %s288 = scalar_select %p287, %s21, 1
        %s289 = smul.addr %s288, 8
        %s290 = scalar_lea.vmem %s6, %s289
        %v291 = vld [vmem:[%s286] sm:$0xff]
        %vm292 = vcmask 261120
        %v293 = vsel %vm292, %v291, 0.0
        %294 = vadd.xlane.f32.xlu0 %v293
        %v295 = vpop.xlane.xlu0 %294
        %v296 = vrcp.pop 32.0
        %v297 = vmul.f32 %v295, %v296
        %v298 = vsub.f32 %v291, %v297
        %v299 = vmul.f32 %v298, %v298
        %v300 = vsel %vm292, %v299, 0.0
        %301 = vadd.xlane.f32.xlu0 %v300
        %v302 = vpop.xlane.xlu0 %301
        %v303 = vmul.f32 %v302, %v296
        %v304 = vadd.f32 %v303, 1e-05
        %v305 = vrsqrt.pop %v304
        %v306 = vmul.f32 %v298, %v305
        %v307 = vld [vmem:[%s1] sm:$0x1]
        %v309 = vlaneseq
        %v310 = vshrl.u32 %v309, 7
        %v311 = vsub.s32 0, %v310
        %v312 = vrot.slane %v307, %v311
        %v314 = vmul.f32 %v306, %v312
        %v315 = vld [vmem:[%s2] sm:$0x1]
        %v317 = vlaneseq
        %v318 = vshrl.u32 %v317, 7
        %v319 = vsub.s32 0, %v318
        %v320 = vrot.slane %v315, %v319
        %v322 = vadd.f32 %v314, %v320
        %v323 = vld [vmem:[%s3] sm:$0xff]
        %v324 = vld [vmem:[%s3 + $0x8] sm:$0xff]
        %v325 = vld [vmem:[%s3 + $0x10] sm:$0xff]
        %v326 = vld [vmem:[%s3 + $0x18] sm:$0xff]
        %v327 = vld [vmem:[%s290] sm:$0xff]
        %v329 = vsel %vm292, %v322, 0
        %331 = vmatprep.subr.mxu0 0.0
        %332 = vmatpush1.msra.mxu0 0.0
        %333 = vmatprep.subr.mxu0 0.0
        %334 = vmatpush1.msra.mxu0 0.0
        %335 = vmatprep.subr.mxu0 0.0
        %336 = vmatpush1.msra.mxu0 0.0
        %337 = vmatprep.subr.mxu0 0.0
        %338 = vmatpush1.msra.mxu0 0.0
        %339 = vmatprep.subr.mxu0 0.0
        %340 = vmatpush1.msra.mxu0 0.0
        %341 = vmatprep.subr.mxu0 0.0
        %342 = vmatpush1.msra.mxu0 0.0
        %343 = vmatprep.subr.mxu0 0.0
        %344 = vmatpush1.msra.mxu0 0.0
        %345 = vmatprep.subr.mxu0 0.0
        %346 = vmatpush1.msra.mxu0 0.0
        %347 = vmatprep.subr.mxu0 0.0
        %348 = vmatpush1.msra.mxu0 0.0
        %349 = vmatprep.subr.mxu0 0.0
        %350 = vmatpush1.msra.mxu0 0.0
        %351 = vmatprep.subr.mxu0 0.0
        %352 = vmatpush1.msra.mxu0 0.0
        %353 = vmatprep.subr.mxu0 0.0
        %354 = vmatpush1.msra.mxu0 0.0
        %355 = vmatprep.subr.mxu0 0.0
        %356 = vmatpush1.msra.mxu0 %v326
        %357 = vmatprep.subr.mxu0 0.0
        %358 = vmatpush1.msra.mxu0 %v325
        %359 = vmatprep.subr.mxu0 0.0
        %360 = vmatpush1.msra.mxu0 %v324
        %361 = vmatprep.subr.mxu0 0.0
        %362 = vmatpush1.msra.mxu0 %v323
        %363 = vmatprep.subr.mxu0 0.0
        %364 = vmatpush2.msra.mxu0 0.0
        %365 = vmatprep.subr.mxu0 0.0
        %366 = vmatpush2.msra.mxu0 0.0
        %367 = vmatprep.subr.mxu0 0.0
        %368 = vmatpush2.msra.mxu0 0.0
        %369 = vmatprep.subr.mxu0 0.0
        %370 = vmatpush2.msra.mxu0 0.0
        %371 = vmatprep.subr.mxu0 0.0
        %372 = vmatpush2.msra.mxu0 0.0
        %373 = vmatprep.subr.mxu0 0.0
        %374 = vmatpush2.msra.mxu0 0.0
        %375 = vmatprep.subr.mxu0 0.0
        %376 = vmatpush2.msra.mxu0 0.0
        %377 = vmatprep.subr.mxu0 0.0
        %378 = vmatpush2.msra.mxu0 0.0
        %379 = vmatprep.subr.mxu0 0.0
        %380 = vmatpush2.msra.mxu0 0.0
        %381 = vmatprep.subr.mxu0 0.0
        %382 = vmatpush2.msra.mxu0 0.0
        %383 = vmatprep.subr.mxu0 0.0
        %384 = vmatpush2.msra.mxu0 0.0
        %385 = vmatprep.subr.mxu0 0.0
        %386 = vmatpush2.msra.mxu0 0.0
        %387 = vmatprep.subr.mxu0 0.0
        %388 = vmatpush2.msra.mxu0 0.0
        %389 = vmatprep.subr.mxu0 0.0
        %390 = vmatpush2.msra.mxu0 0.0
        %391 = vmatprep.subr.mxu0 0.0
        %392 = vmatpush2.msra.mxu0 0.0
        %393 = vmatprep.subr.mxu0 0.0
        %394 = vmatpush2.msra.mxu0 0.0
        %395 = vmatprep.mubr.f32.mxu0 0.0
        %396 = vmatmul.mubr.f32.gmra.mxu0 %v329
        %v397 = vpop.f32.mrf.mxu0
        %v398 = vadd.f32 %v327, %v397
        %v399 = vpop.f32.mrf.mxu0
        %400 = vdwg.mxu0
        %v401 = vlaneseq
        %v402 = vand.u32 %v401, 127
        %vm403 = vcmp.ge.s32.totalorder %v402, 0
        %vm404 = vcmp.ge.s32.totalorder %v402, 16
        %vm405 = vcmp.ge.s32.totalorder %v402, 32
        %vm406 = vcmp.ge.s32.totalorder %v402, 48
        %vm407 = vcmp.lt.s32.totalorder %v402, 16
        %vm408 = vcmp.lt.s32.totalorder %v402, 32
        %vm409 = vcmp.lt.s32.totalorder %v402, 48
        %vm410 = vcmp.lt.s32.totalorder %v402, 64
        %vm411 = vmand %vm403, %vm407
        %vm412 = vmand %vm404, %vm408
        %vm413 = vmand %vm405, %vm409
        %vm414 = vmand %vm406, %vm410
        %v415 = vsel %vm411, %v398, -inf
        %v416 = vsel %vm412, %v398, -inf
        %v417 = vsel %vm413, %v398, -inf
        %v418 = vsel %vm414, %v398, -inf
        %vm419 = vcmask 523264
        %v420 = vsel %vm419, %v415, -inf
        %421 = vmax.xlane.f32.xlu0 %v420
        %v422 = vpop.xlane.xlu0 %421
        %v423 = vsel %vm419, %v416, -inf
        %424 = vmax.xlane.f32.xlu0 %v423
        %v425 = vpop.xlane.xlu0 %424
        %v426 = vsel %vm419, %v417, -inf
        %427 = vmax.xlane.f32.xlu0 %v426
        %v428 = vpop.xlane.xlu0 %427
        %v429 = vsel %vm419, %v418, -inf
        %430 = vmax.xlane.f32.xlu0 %v429
        %v431 = vpop.xlane.xlu0 %430
        %vm432 = vcmp.ge.f32.partialorder %v415, %v422
        %vm433 = vcmp.ge.f32.partialorder %v416, %v425
        %vm434 = vcmp.ge.f32.partialorder %v417, %v428
        %vm435 = vcmp.ge.f32.partialorder %v418, %v431
        %v436 = vsel %vm432, %v402, 64
        %v437 = vsel %vm433, %v402, 64
        %v438 = vsel %vm434, %v402, 64
        %v439 = vsel %vm435, %v402, 64
        %v440 = vsel %vm419, %v436, 2147483647
        %v441 = vand.u32 %v440, 65535
        %v442 = vshra.s32 %v440, 16
        %v443 = vcvt.s32.f32 %v441
        %v444 = vcvt.s32.f32 %v442
        %445 = vmin.xlane.f32.xlu0 %v444
        %v446 = vpop.xlane.xlu0 %445
        %vm447 = vcmp.eq.f32.partialorder %v444, %v446
        %v448 = vsel %vm447, %v443, inf
        %449 = vmin.xlane.f32.xlu0 %v448
        %v450 = vpop.xlane.xlu0 %449
        %v451 = vcvt.f32.s32 %v450
        %v452 = vcvt.f32.s32 %v446
        %v453 = vshll.u32 %v452, 16
        %v454 = vadd.s32 %v453, %v451
        %v455 = vsel %vm419, %v437, 2147483647
        %v456 = vand.u32 %v455, 65535
        %v457 = vshra.s32 %v455, 16
        %v458 = vcvt.s32.f32 %v456
        %v459 = vcvt.s32.f32 %v457
        %460 = vmin.xlane.f32.xlu0 %v459
        %v461 = vpop.xlane.xlu0 %460
        %vm462 = vcmp.eq.f32.partialorder %v459, %v461
        %v463 = vsel %vm462, %v458, inf
        %464 = vmin.xlane.f32.xlu0 %v463
        %v465 = vpop.xlane.xlu0 %464
        %v466 = vcvt.f32.s32 %v465
        %v467 = vcvt.f32.s32 %v461
        %v468 = vshll.u32 %v467, 16
        %v469 = vadd.s32 %v468, %v466
        %v470 = vsel %vm419, %v438, 2147483647
        %v471 = vand.u32 %v470, 65535
        %v472 = vshra.s32 %v470, 16
        %v473 = vcvt.s32.f32 %v471
        %v474 = vcvt.s32.f32 %v472
        %475 = vmin.xlane.f32.xlu0 %v474
        %v476 = vpop.xlane.xlu0 %475
        %vm477 = vcmp.eq.f32.partialorder %v474, %v476
        %v478 = vsel %vm477, %v473, inf
        %479 = vmin.xlane.f32.xlu0 %v478
        %v480 = vpop.xlane.xlu0 %479
        %v481 = vcvt.f32.s32 %v480
        %v482 = vcvt.f32.s32 %v476
        %v483 = vshll.u32 %v482, 16
        %v484 = vadd.s32 %v483, %v481
        %v485 = vsel %vm419, %v439, 2147483647
        %v486 = vand.u32 %v485, 65535
        %v487 = vshra.s32 %v485, 16
        %v488 = vcvt.s32.f32 %v486
        %v489 = vcvt.s32.f32 %v487
        %490 = vmin.xlane.f32.xlu0 %v489
        %v491 = vpop.xlane.xlu0 %490
        %vm492 = vcmp.eq.f32.partialorder %v489, %v491
        %v493 = vsel %vm492, %v488, inf
        %494 = vmin.xlane.f32.xlu0 %v493
        %v495 = vpop.xlane.xlu0 %494
        %v496 = vcvt.f32.s32 %v495
        %v497 = vcvt.f32.s32 %v491
        %v498 = vshll.u32 %v497, 16
        %v499 = vadd.s32 %v498, %v496
        %vm500 = vcmp.eq.s32.totalorder %v402, %v454
        %vm501 = vcmp.eq.s32.totalorder %v402, %v469
        %vm502 = vcmp.eq.s32.totalorder %v402, %v484
        %vm503 = vcmp.eq.s32.totalorder %v402, %v499
        %v504 = vsel %vm500, 1, 0
        %v505 = vsel %vm501, 1, 0
        %v506 = vsel %vm502, 1, 0
        %v507 = vsel %vm503, 1, 0
        %v508 = vcvt.s32.f32 %v504
        %v509 = vcvt.s32.f32 %v505
        %v510 = vcvt.s32.f32 %v506
        %v511 = vcvt.s32.f32 %v507
        %v512 = vsel %vm419, %v508, 0.0
        %v513 = vsel %vm419, %v509, 0.0
        %v514 = vadd.f32 %v512, %v513
        %v515 = vsel %vm419, %v510, 0.0
        %v516 = vadd.f32 %v514, %v515
        %v517 = vsel %vm419, %v511, 0.0
        %v518 = vadd.f32 %v516, %v517
        %v519 = vld [vmem:[%s4] sm:$0xff]
        %v520 = vld [vmem:[%s4 + $0x8] sm:$0xff]
        %v521 = vld [vmem:[%s4 + $0x10] sm:$0xff]
        %v522 = vld [vmem:[%s4 + $0x18] sm:$0xff]
        %v523 = vld [vmem:[%s4 + $0x20] sm:$0xff]
        %v524 = vld [vmem:[%s4 + $0x28] sm:$0xff]
        %v525 = vld [vmem:[%s4 + $0x30] sm:$0xff]
        %v526 = vld [vmem:[%s4 + $0x38] sm:$0xff]
        %v527 = vld [vmem:[%s5] sm:$0x1]
        %v529 = vlaneseq
        %v530 = vshrl.u32 %v529, 7
        %v531 = vsub.s32 0, %v530
        %v532 = vrot.slane %v527, %v531
        %v535 = vsel %vm419, %v518, 0
        %537 = vmatprep.subr.mxu0 0.0
        %538 = vmatpush1.msra.mxu0 0.0
        %539 = vmatprep.subr.mxu0 0.0
        %540 = vmatpush1.msra.mxu0 0.0
        %541 = vmatprep.subr.mxu0 0.0
        %542 = vmatpush1.msra.mxu0 0.0
        %543 = vmatprep.subr.mxu0 0.0
        %544 = vmatpush1.msra.mxu0 0.0
        %545 = vmatprep.subr.mxu0 0.0
        %546 = vmatpush1.msra.mxu0 0.0
        %547 = vmatprep.subr.mxu0 0.0
        %548 = vmatpush1.msra.mxu0 0.0
        %549 = vmatprep.subr.mxu0 0.0
        %550 = vmatpush1.msra.mxu0 0.0
        %551 = vmatprep.subr.mxu0 0.0
        %552 = vmatpush1.msra.mxu0 0.0
        %553 = vmatprep.subr.mxu0 0.0
        %554 = vmatpush1.msra.mxu0 %v526
        %555 = vmatprep.subr.mxu0 0.0
        %556 = vmatpush1.msra.mxu0 %v525
        %557 = vmatprep.subr.mxu0 0.0
        %558 = vmatpush1.msra.mxu0 %v524
        %559 = vmatprep.subr.mxu0 0.0
        %560 = vmatpush1.msra.mxu0 %v523
        %561 = vmatprep.subr.mxu0 0.0
        %562 = vmatpush1.msra.mxu0 %v522
        %563 = vmatprep.subr.mxu0 0.0
        %564 = vmatpush1.msra.mxu0 %v521
        %565 = vmatprep.subr.mxu0 0.0
        %566 = vmatpush1.msra.mxu0 %v520
        %567 = vmatprep.subr.mxu0 0.0
        %568 = vmatpush1.msra.mxu0 %v519
        %569 = vmatprep.subr.mxu0 0.0
        %570 = vmatpush2.msra.mxu0 0.0
        %571 = vmatprep.subr.mxu0 0.0
        %572 = vmatpush2.msra.mxu0 0.0
        %573 = vmatprep.subr.mxu0 0.0
        %574 = vmatpush2.msra.mxu0 0.0
        %575 = vmatprep.subr.mxu0 0.0
        %576 = vmatpush2.msra.mxu0 0.0
        %577 = vmatprep.subr.mxu0 0.0
        %578 = vmatpush2.msra.mxu0 0.0
        %579 = vmatprep.subr.mxu0 0.0
        %580 = vmatpush2.msra.mxu0 0.0
        %581 = vmatprep.subr.mxu0 0.0
        %582 = vmatpush2.msra.mxu0 0.0
        %583 = vmatprep.subr.mxu0 0.0
        %584 = vmatpush2.msra.mxu0 0.0
        %585 = vmatprep.subr.mxu0 0.0
        %586 = vmatpush2.msra.mxu0 0.0
        %587 = vmatprep.subr.mxu0 0.0
        %588 = vmatpush2.msra.mxu0 0.0
        %589 = vmatprep.subr.mxu0 0.0
        %590 = vmatpush2.msra.mxu0 0.0
        %591 = vmatprep.subr.mxu0 0.0
        %592 = vmatpush2.msra.mxu0 0.0
        %593 = vmatprep.subr.mxu0 0.0
        %594 = vmatpush2.msra.mxu0 0.0
        %595 = vmatprep.subr.mxu0 0.0
        %596 = vmatpush2.msra.mxu0 0.0
        %597 = vmatprep.subr.mxu0 0.0
        %598 = vmatpush2.msra.mxu0 0.0
        %599 = vmatprep.subr.mxu0 0.0
        %600 = vmatpush2.msra.mxu0 0.0
        %601 = vmatprep.mubr.f32.mxu0 0.0
        %602 = vmatmul.mubr.f32.gmra.mxu0 %v535
        %v603 = vpop.f32.mrf.mxu0
        %v604 = vadd.f32 %v532, %v603
        %v605 = vpop.f32.mrf.mxu0
        %606 = vdwg.mxu0
        %v607 = vadd.f32 %v291, %v604
        %608 = vst.msk [vmem:[%s282] sm:$0xff] %vm292, %v607
        %s609 = sand.u32 %s186, 1
        %s610 = scalar_lea.sflag [#allocation3], %s609
        %s611 = sand.u32 %s186, 1
        %s612 = smul.addr %s611, 8
        %s613 = scalar_lea.vmem [#allocation2], %s612
        // Predicated region
        $region49: #{tpu_custom_call.1} parent=47 // pred_check
          %p614 = pneg %p196
        $region50: #{tpu_custom_call.1} parent=47 // pred_check_branch
          %616 = sbr.rel (%p614) target = $region52
        $region51: #{tpu_custom_call.1} parent=47 // pred_region
          %s618 = ssub.s32 128, 128
          %619 = vsyncadd %s610, %s618
          %s620 = smul.addr %s21, 128
          %s621 = scalar_lea.hbm %s7, %s620
          %s623 = sshll.u32 %s613, 4
          %s624 = int_to_ptr.vmem [resolvable:$true] %s623
          %626 = dma.vmem_to_hbm [thread:$0]  %s624, 128, %s621, %s610
        $region52: #{tpu_custom_call.1} parent=47 // pred_fallthru
          _
      $region48: #{tpu_custom_call.1} parent=5 // pred_fallthru
        _
      %p627 = scmp.le.s32.totalorder 2, %s16
      // Predicated region
      $region53: #{tpu_custom_call.1} parent=5 // pred_check
        %p628 = pneg %p627
      $region54: #{tpu_custom_call.1} parent=5 // pred_check_branch
        %630 = sbr.rel (%p628) target = $region56
      $region55: #{tpu_custom_call.1} parent=5 // pred_region
        %s631 = ssub.s32 %s16, 2
        // Predicated region
        $region57: #{tpu_custom_call.1} parent=55 // pred_check
          %p632 = pneg %p202
        $region58: #{tpu_custom_call.1} parent=55 // pred_check_branch
          %634 = sbr.rel (%p632) target = $region60
        $region59: #{tpu_custom_call.1} parent=55 // pred_region
          %s635 = sand.u32 %s187, 1
          %s636 = scalar_lea.sflag [#allocation3], %s635
          %s637 = sand.u32 %s187, 1
          %s638 = smul.addr %s637, 8
          %s639 = scalar_lea.vmem [#allocation2], %s638
          %640 = dma.done %s636, 128
        $region60: #{tpu_custom_call.1} parent=55 // pred_fallthru
          _
      $region56: #{tpu_custom_call.1} parent=5 // pred_fallthru
        _
    $region6: #{tpu_custom_call.1} parent=1 // loop_footer
      %s20 = sadd.s32 1, %s16
    $region7: #{tpu_custom_call.1} parent=1 // loop_footer_branch
      %15 = sbr.rel target = $region3
    $region8: #{tpu_custom_call.1} parent=1 // loop_exit
      _
    %641 = vsyncpa [#allocation3], 1
    %s642 = scalar_lea.sflag [#allocation3], 1
    %643 = vsyncpa %s642, 1

</llo_original>
